<compile_context>
chip_gen: v7x
topology: tpu7x:2x2x1
jax: 0.10.0
libtpu: 0.0.40
codegen_flags: <defaults>
</compile_context>

<pallas_src>
import functools

import jax
import jax.numpy as jnp
from jax.experimental import pallas as pl
from jax.experimental.pallas import tpu as pltpu

H1, H2, OUT = 256, 64, 1
LN_EPS = 1e-5


def _round_up(x, m):
    return ((x + m - 1) // m) * m


def _layer_norm(x, gamma, beta):
    # Single-pass statistics: sum and sum-of-squares together, then
    # var = max(E[x^2] - mean^2, 0).  Halves the cross-lane reduction passes
    # vs. mean-then-centered-variance; rsqrt lands on the EUP (free slot).
    n = x.shape[-1]
    s = jnp.sum(x, axis=-1, keepdims=True)
    sq = jnp.sum(x * x, axis=-1, keepdims=True)
    mean = s * (1.0 / n)
    var = jnp.maximum(sq * (1.0 / n) - mean * mean, 0.0)
    inv = jax.lax.rsqrt(var + LN_EPS)
    return (x - mean) * inv * gamma + beta


def ffnn_kernel(x_ref, *refs, layer_norm: bool):
    if layer_norm:
        (w1_ref, b1_ref, g1_ref, be1_ref,
         w2_ref, b2_ref, g2_ref, be2_ref,
         w3_ref, b3_ref, o_ref) = refs
    else:
        (w1_ref, b1_ref, w2_ref, b2_ref, w3_ref, b3_ref, o_ref) = refs
        g1_ref = be1_ref = g2_ref = be2_ref = None

    # x tile arrives f32 straight from HBM; cast to bf16 in-kernel (VALU slack).
    x = x_ref[...].astype(jnp.bfloat16)  # (tb, D)

    # fc1 -> norm1 -> relu   (dropout with p=0 is identity)
    h = jnp.dot(x, w1_ref[...], preferred_element_type=jnp.float32) + b1_ref[...]
    if layer_norm:
        h = _layer_norm(h, g1_ref[...], be1_ref[...])
    h = jnp.maximum(h, 0.0)

    # fc2 -> norm2 -> relu
    h = jnp.dot(h.astype(jnp.bfloat16), w2_ref[...],
                preferred_element_type=jnp.float32) + b2_ref[...]
    if layer_norm:
        h = _layer_norm(h, g2_ref[...], be2_ref[...])
    h = jnp.maximum(h, 0.0)

    # fc3: (tb, H2) @ (H2, 1) -> (tb, 1).  Output traffic is tiny (4*tb B/step),
    # so a plain dot into a (tb, 1) block is preferred over a transposed form.
    o = jnp.dot(h.astype(jnp.bfloat16), w3_ref[...],
                preferred_element_type=jnp.float32) + b3_ref[...]
    o_ref[...] = o.astype(o_ref.dtype)


def prepare_params(params):
    """One-time weight casts / reshapes (hoisted out of the per-call path)."""
    return {
        "w1": params["w1"].astype(jnp.bfloat16),           # (D, 256)
        "b1": params["b1"].reshape(1, H1).astype(jnp.float32),
        "w2": params["w2"].astype(jnp.bfloat16),            # (256, 64)
        "b2": params["b2"].reshape(1, H2).astype(jnp.float32),
        "w3": params["w3"].astype(jnp.bfloat16),             # (64, 1)
        "b3": params["b3"].reshape(1, 1).astype(jnp.float32),
        "g1": params["g1"].reshape(1, H1).astype(jnp.float32),
        "be1": params["be1"].reshape(1, H1).astype(jnp.float32),
        "g2": params["g2"].reshape(1, H2).astype(jnp.float32),
        "be2": params["be2"].reshape(1, H2).astype(jnp.float32),
    }


def _pick_tile(B):
    """Batch tile: multiple of 128, up to 2048; >=2 grid steps when feasible
    so v7x's two TensorCores both get work via the parallel axis."""
    b_ceil = _round_up(B, 128)
    if b_ceil <= 256:
        return b_ceil                       # tiny batch: single step
    if b_ceil <= 4096:
        return _round_up((b_ceil + 1) // 2, 128)   # 2 steps
    return 2048                             # large batch: big tiles, many steps


def ffnn_forward(x, prepped, *, layer_norm=False, block_b=None):
    """Fused FFNN kernel. x: (B, input_dim) f32 -> (B, 1) f32."""
    B, D = x.shape

    if block_b is None:
        tb = _pick_tile(B)
    else:
        assert block_b % 128 == 0, "block_b must be a multiple of 128"
        tb = block_b
    grid = pl.cdiv(B, tb)

    full = lambda shape: pl.BlockSpec(shape, lambda i: (0, 0))

    in_specs = [pl.BlockSpec((tb, D), lambda i: (i, 0)),   # x tile (f32)
                full((D, H1)), full((1, H1))]
    args = [x, prepped["w1"], prepped["b1"]]
    if layer_norm:
        in_specs += [full((1, H1)), full((1, H1))]
        args += [prepped["g1"], prepped["be1"]]
    in_specs += [full((H1, H2)), full((1, H2))]
    args += [prepped["w2"], prepped["b2"]]
    if layer_norm:
        in_specs += [full((1, H2)), full((1, H2))]
        args += [prepped["g2"], prepped["be2"]]
    in_specs += [full((H2, OUT)), full((1, 1))]
    args += [prepped["w3"], prepped["b3"]]

    flops = 2 * B * (D * H1 + H1 * H2 + H2 * OUT)
    bytes_accessed = (B * D * 4                                   # x (f32)
                      + (prepped["w1"].size + prepped["w2"].size
                         + prepped["w3"].size) * 2                # bf16 weights
                      + (prepped["b1"].size + prepped["b2"].size
                         + prepped["b3"].size) * 4
                      + B * 4)                                    # output
    cost = pl.CostEstimate(
        flops=flops,
        transcendentals=(2 * B if layer_norm else 0),
        bytes_accessed=bytes_accessed)

    return pl.pallas_call(
        functools.partial(ffnn_kernel, layer_norm=layer_norm),
        out_shape=jax.ShapeDtypeStruct((B, OUT), jnp.float32),
        grid_spec=pltpu.PrefetchScalarGridSpec(
            num_scalar_prefetch=0,
            grid=(grid,),
            in_specs=in_specs,
            out_specs=pl.BlockSpec((tb, OUT), lambda i: (i, 0)),
        ),
        compiler_params=pltpu.CompilerParams(
            dimension_semantics=("parallel",)),
        cost_estimate=cost,
    )(*args)


def ffnn_reference(x, params, *, layer_norm=False):
    """Pure-JAX reference mirroring the kernel's bf16-matmul / f32-accum math."""
    bf = jnp.bfloat16
    h = jnp.dot(x.astype(bf), params["w1"].astype(bf),
                preferred_element_type=jnp.float32) + params["b1"]
    if layer_norm:
        h = _layer_norm(h, params["g1"], params["be1"])
    h = jnp.maximum(h, 0.0)
    h = jnp.dot(h.astype(bf), params["w2"].astype(bf),
                preferred_element_type=jnp.float32) + params["b2"]
    if layer_norm:
        h = _layer_norm(h, params["g2"], params["be2"])
    h = jnp.maximum(h, 0.0)
    return jnp.dot(h.astype(bf), params["w3"].astype(bf),
                   preferred_element_type=jnp.float32) + params["b3"]


def init_params(key, input_dim):
    ks = jax.random.split(key, 6)

    def linear(kw, kb, fan_in, fan_out):
        bound = 1.0 / jnp.sqrt(fan_in)
        w = jax.random.uniform(kw, (fan_in, fan_out), jnp.float32, -bound, bound)
        b = jax.random.uniform(kb, (1, fan_out), jnp.float32, -bound, bound)
        return w, b

    w1, b1 = linear(ks[0], ks[1], input_dim, H1)
    w2, b2 = linear(ks[2], ks[3], H1, H2)
    w3, b3 = linear(ks[4], ks[5], H2, OUT)
    return {
        "w1": w1, "b1": b1, "g1": jnp.ones((1, H1)), "be1": jnp.zeros((1, H1)),
        "w2": w2, "b2": b2, "g2": jnp.ones((1, H2)), "be2": jnp.zeros((1, H2)),
        "w3": w3, "b3": b3,
    }


if __name__ == "__main__":
    key = jax.random.PRNGKey(0)
    k_param, k_x, k_x2 = jax.random.split(key, 3)

    batch, input_dim = 8, 32
    params = init_params(k_param, input_dim)
    prepped = jax.tree_util.tree_map(jax.block_until_ready, prepare_params(params))
    x = jax.random.normal(k_x, (batch, input_dim), jnp.float32)

    # Default module config: dropout_prob=0, layer_norm=False.
    out = jax.block_until_ready(ffnn_forward(x, prepped, layer_norm=False))
    ref = ffnn_reference(x, params, layer_norm=False)
    assert out.shape == (batch, 1)
    assert jnp.allclose(out, ref, atol=2e-3, rtol=2e-3), "mismatch vs JAX reference"

    # LayerNorm variant of the kernel.
    out_ln = jax.block_until_ready(ffnn_forward(x, prepped, layer_norm=True))
    ref_ln = ffnn_reference(x, params, layer_norm=True)
    assert jnp.allclose(out_ln, ref_ln, atol=2e-3, rtol=2e-3), "LN mismatch"

    # Multi-step grid + ragged-tail path (batch not a multiple of the tile).
    x2 = jax.random.normal(k_x2, (200, input_dim), jnp.float32)
    out2 = jax.block_until_ready(ffnn_forward(x2, prepped, block_b=128))
    ref2 = ffnn_reference(x2, params)
    assert out2.shape == (200, 1)
    assert jnp.allclose(out2, ref2, atol=2e-3, rtol=2e-3), "tiled mismatch"

    # Auto tile-picker path (splits a mid-size batch into 2 parallel steps).
    x3 = jax.random.normal(k_x2, (1000, input_dim), jnp.float32)
    out3 = jax.block_until_ready(ffnn_forward(x3, prepped))
    ref3 = ffnn_reference(x3, params)
    assert out3.shape == (1000, 1)
    assert jnp.allclose(out3, ref3, atol=2e-3, rtol=2e-3), "auto-tile mismatch"

    print("KERNEL_OK")
</pallas_src>

<mosaic_0001>
module attributes {stable_mosaic.version = 11 : i64} {
  func.func @ffnn_kernel(%arg0: i32, %arg1: memref<128x32xf32, #tpu.memory_space<vmem>>, %arg2: memref<32x256xbf16, #tpu.memory_space<vmem>>, %arg3: memref<1x256xf32, #tpu.memory_space<vmem>>, %arg4: memref<256x64xbf16, #tpu.memory_space<vmem>>, %arg5: memref<1x64xf32, #tpu.memory_space<vmem>>, %arg6: memref<64x1xbf16, #tpu.memory_space<vmem>>, %arg7: memref<1x1xf32, #tpu.memory_space<vmem>>, %arg8: memref<128x1xf32, #tpu.memory_space<vmem>>) attributes {dimension_semantics = [#tpu.dimension_semantics<parallel>], iteration_bounds = array<i64: 1>, scalar_prefetch = 0 : i64, scratch_operands = 0 : i64, tpu.core_type = #tpu.core_type<tc>, window_params = [{transform_indices = @transform_0, window_bounds = array<i64: 128, 32>}, {pipeline_mode = #tpu.pipeline_mode<synchronous>, transform_indices = @transform_1, window_bounds = array<i64: 32, 256>}, {pipeline_mode = #tpu.pipeline_mode<synchronous>, transform_indices = @transform_2, window_bounds = array<i64: 1, 256>}, {pipeline_mode = #tpu.pipeline_mode<synchronous>, transform_indices = @transform_3, window_bounds = array<i64: 256, 64>}, {pipeline_mode = #tpu.pipeline_mode<synchronous>, transform_indices = @transform_4, window_bounds = array<i64: 1, 64>}, {pipeline_mode = #tpu.pipeline_mode<synchronous>, transform_indices = @transform_5, window_bounds = array<i64: 64, 1>}, {pipeline_mode = #tpu.pipeline_mode<synchronous>, transform_indices = @transform_6, window_bounds = array<i64: 1, 1>}, {transform_indices = @transform_7, window_bounds = array<i64: 128, 1>}]} {
    %c0 = arith.constant 0 : index
    %c0_0 = arith.constant 0 : index
    %0 = vector.load %arg1[%c0, %c0_0] : memref<128x32xf32, #tpu.memory_space<vmem>>, vector<128x32xf32>
    %1 = arith.truncf %0 : vector<128x32xf32> to vector<128x32xbf16>
    %c0_1 = arith.constant 0 : index
    %c0_2 = arith.constant 0 : index
    %2 = vector.load %arg2[%c0_1, %c0_2] : memref<32x256xbf16, #tpu.memory_space<vmem>>, vector<32x256xbf16>
    %cst = arith.constant dense<0.000000e+00> : vector<128x256xf32>
    %3 = tpu.matmul %1, %2, %cst {dimension_numbers = #tpu.dot_dimension_numbers<[1], [0], [0], [1], [0, 0, 1, 1], [], []>} : vector<128x32xbf16>, vector<32x256xbf16>, vector<128x256xf32> -> vector<128x256xf32>
    %c0_3 = arith.constant 0 : index
    %c0_4 = arith.constant 0 : index
    %4 = vector.load %arg3[%c0_3, %c0_4] : memref<1x256xf32, #tpu.memory_space<vmem>>, vector<1x256xf32>
    %5 = vector.broadcast %4 : vector<1x256xf32> to vector<128x256xf32>
    %6 = arith.addf %3, %5 : vector<128x256xf32>
    %cst_5 = arith.constant 0.000000e+00 : f32
    %7 = vector.broadcast %cst_5 : f32 to vector<128x256xf32>
    %8 = arith.maximumf %6, %7 : vector<128x256xf32>
    %9 = arith.truncf %8 : vector<128x256xf32> to vector<128x256xbf16>
    %c0_6 = arith.constant 0 : index
    %c0_7 = arith.constant 0 : index
    %10 = vector.load %arg4[%c0_6, %c0_7] : memref<256x64xbf16, #tpu.memory_space<vmem>>, vector<256x64xbf16>
    %cst_8 = arith.constant dense<0.000000e+00> : vector<128x64xf32>
    %11 = tpu.matmul %9, %10, %cst_8 {dimension_numbers = #tpu.dot_dimension_numbers<[1], [0], [0], [1], [0, 0, 1, 1], [], []>} : vector<128x256xbf16>, vector<256x64xbf16>, vector<128x64xf32> -> vector<128x64xf32>
    %c0_9 = arith.constant 0 : index
    %c0_10 = arith.constant 0 : index
    %12 = vector.load %arg5[%c0_9, %c0_10] : memref<1x64xf32, #tpu.memory_space<vmem>>, vector<1x64xf32>
    %13 = vector.broadcast %12 : vector<1x64xf32> to vector<128x64xf32>
    %14 = arith.addf %11, %13 : vector<128x64xf32>
    %cst_11 = arith.constant 0.000000e+00 : f32
    %15 = vector.broadcast %cst_11 : f32 to vector<128x64xf32>
    %16 = arith.maximumf %14, %15 : vector<128x64xf32>
    %17 = arith.truncf %16 : vector<128x64xf32> to vector<128x64xbf16>
    %c0_12 = arith.constant 0 : index
    %c0_13 = arith.constant 0 : index
    %18 = vector.load %arg6[%c0_12, %c0_13] : memref<64x1xbf16, #tpu.memory_space<vmem>>, vector<64x1xbf16>
    %cst_14 = arith.constant dense<0.000000e+00> : vector<128x1xf32>
    %19 = tpu.matmul %17, %18, %cst_14 {dimension_numbers = #tpu.dot_dimension_numbers<[1], [0], [0], [1], [0, 0, 1, 1], [], []>} : vector<128x64xbf16>, vector<64x1xbf16>, vector<128x1xf32> -> vector<128x1xf32>
    %c0_15 = arith.constant 0 : index
    %c0_16 = arith.constant 0 : index
    %20 = vector.load %arg7[%c0_15, %c0_16] : memref<1x1xf32, #tpu.memory_space<vmem>>, vector<1x1xf32>
    %21 = vector.broadcast %20 : vector<1x1xf32> to vector<128x1xf32>
    %22 = arith.addf %19, %21 : vector<128x1xf32>
    %c0_17 = arith.constant 0 : index
    %c0_18 = arith.constant 0 : index
    %23 = vector.load %arg8[%c0_17, %c0_18] : memref<128x1xf32, #tpu.memory_space<vmem>>, vector<128x1xf32>
    tpu.vector_store %arg8[%c0_17, %c0_18], %22 {strides = array<i32>} : memref<128x1xf32, #tpu.memory_space<vmem>>, vector<128x1xf32>,
    return
  }
  func.func @transform_0(%arg0: i32) -> (i32, i32) {
    %c0_i32 = arith.constant 0 : i32
    %c0_i32_0 = arith.constant 0 : i32
    return %arg0, %c0_i32 : i32, i32
  }
  func.func @transform_1(%arg0: i32) -> (i32, i32) {
    %c0_i32 = arith.constant 0 : i32
    %c0_i32_0 = arith.constant 0 : i32
    %c0_i32_1 = arith.constant 0 : i32
    return %c0_i32, %c0_i32_0 : i32, i32
  }
  func.func @transform_2(%arg0: i32) -> (i32, i32) {
    %c0_i32 = arith.constant 0 : i32
    %c0_i32_0 = arith.constant 0 : i32
    %c0_i32_1 = arith.constant 0 : i32
    return %c0_i32, %c0_i32_0 : i32, i32
  }
  func.func @transform_3(%arg0: i32) -> (i32, i32) {
    %c0_i32 = arith.constant 0 : i32
    %c0_i32_0 = arith.constant 0 : i32
    %c0_i32_1 = arith.constant 0 : i32
    return %c0_i32, %c0_i32_0 : i32, i32
  }
  func.func @transform_4(%arg0: i32) -> (i32, i32) {
    %c0_i32 = arith.constant 0 : i32
    %c0_i32_0 = arith.constant 0 : i32
    %c0_i32_1 = arith.constant 0 : i32
    return %c0_i32, %c0_i32_0 : i32, i32
  }
  func.func @transform_5(%arg0: i32) -> (i32, i32) {
    %c0_i32 = arith.constant 0 : i32
    %c0_i32_0 = arith.constant 0 : i32
    %c0_i32_1 = arith.constant 0 : i32
    return %c0_i32, %c0_i32_0 : i32, i32
  }
  func.func @transform_6(%arg0: i32) -> (i32, i32) {
    %c0_i32 = arith.constant 0 : i32
    %c0_i32_0 = arith.constant 0 : i32
    %c0_i32_1 = arith.constant 0 : i32
    return %c0_i32, %c0_i32_0 : i32, i32
  }
  func.func @transform_7(%arg0: i32) -> (i32, i32) {
    %c0_i32 = arith.constant 0 : i32
    %c0_i32_0 = arith.constant 0 : i32
    return %arg0, %c0_i32 : i32, i32
  }
}

</mosaic_0001>

<llo_original>
// kernel: tpu_custom_call.1
$region0: #{tpu_custom_call.1}
  #allocation0 [shape = 'u32[]', space=smem, size = 0x4, offset = 0x4, fixed_abs, tag = 'smem constant byte address 0x4 - core index']
  #allocation1 [shape = 'u32[144,128]{1,0:T(1,128)}', space=vmem, size = 0x12000, scoped, tag = 'internal scratch']
  #allocation2 [shape = 'f32[1,1]{1,0:T(1,128)S(1)}', space=vmem, size = 0x200, scoped, tag = 'scoped memory for tpu_custom_call.1']
  %s0 = inlined_call_operand.vmem [shape: f32[8,32], index: 0, kind: input, shape index: {}]
  %s1 = inlined_call_operand.vmem [shape: bf16[32,256], index: 1, kind: input, shape index: {}]
  %s2 = inlined_call_operand.vmem [shape: f32[1,256], index: 2, kind: input, shape index: {}]
  %s3 = inlined_call_operand.vmem [shape: bf16[256,64], index: 3, kind: input, shape index: {}]
  %s4 = inlined_call_operand.vmem [shape: f32[1,64], index: 4, kind: input, shape index: {}]
  %s5 = inlined_call_operand.vmem [shape: bf16[64,1], index: 5, kind: input, shape index: {}]
  %s6 = inlined_call_operand.<no memory space> [shape: f32[1,1], index: 6, kind: input, shape index: {}]
  %s7 = inlined_call_operand.vmem [shape: f32[8,1], index: 7, kind: output, shape index: {}]
  %s8 = sld [smem:[#allocation0]]
  $region72: #{tpu_custom_call.1} parent=0
    _
  %s10 = ssub.s32 1, %s8
  %s11 = scalar_select 0, %s10, %s8
  %v12 = vstv %s6
  %13 = vst [vmem:[#allocation2] sm:$0x1] %v12
  $region1: #{tpu_custom_call.1} parent=0
    #allocation3 [shape = 'u8[65536]{0}', space=vmem, size = 0x10000, scoped, tag = 'output window, operand 0, single buffered']
    // Predicated region
    $region2: #{tpu_custom_call.1} parent=1 // pred_check
      _
    $region3: #{tpu_custom_call.1} parent=1 // pred_check_branch
      %15 = sbr.rel (0) target = $region5
    $region4: #{tpu_custom_call.1} parent=1 // pred_region
      _
    $region5: #{tpu_custom_call.1} parent=1 // pred_fallthru
      _
    // Predicated region
    $region6: #{tpu_custom_call.1} parent=1 // pred_check
      _
    $region7: #{tpu_custom_call.1} parent=1 // pred_check_branch
      %17 = sbr.rel (0) target = $region9
    $region8: #{tpu_custom_call.1} parent=1 // pred_region
      _
    $region9: #{tpu_custom_call.1} parent=1 // pred_fallthru
      _
    // Predicated region
    $region10: #{tpu_custom_call.1} parent=1 // pred_check
      _
    $region11: #{tpu_custom_call.1} parent=1 // pred_check_branch
      %19 = sbr.rel (0) target = $region13
    $region12: #{tpu_custom_call.1} parent=1 // pred_region
      _
    $region13: #{tpu_custom_call.1} parent=1 // pred_fallthru
      _
    // Predicated region
    $region14: #{tpu_custom_call.1} parent=1 // pred_check
      _
    $region15: #{tpu_custom_call.1} parent=1 // pred_check_branch
      %21 = sbr.rel (0) target = $region17
    $region16: #{tpu_custom_call.1} parent=1 // pred_region
      _
    $region17: #{tpu_custom_call.1} parent=1 // pred_fallthru
      _
    // Predicated region
    $region18: #{tpu_custom_call.1} parent=1 // pred_check
      _
    $region19: #{tpu_custom_call.1} parent=1 // pred_check_branch
      %23 = sbr.rel (0) target = $region21
    $region20: #{tpu_custom_call.1} parent=1 // pred_region
      _
    $region21: #{tpu_custom_call.1} parent=1 // pred_fallthru
      _
    // Predicated region
    $region22: #{tpu_custom_call.1} parent=1 // pred_check
      _
    $region23: #{tpu_custom_call.1} parent=1 // pred_check_branch
      %25 = sbr.rel (0) target = $region25
    $region24: #{tpu_custom_call.1} parent=1 // pred_region
      _
    $region25: #{tpu_custom_call.1} parent=1 // pred_fallthru
      _
    // Predicated region
    $region26: #{tpu_custom_call.1} parent=1 // pred_check
      _
    $region27: #{tpu_custom_call.1} parent=1 // pred_check_branch
      %27 = sbr.rel (0) target = $region29
    $region28: #{tpu_custom_call.1} parent=1 // pred_region
      _
    $region29: #{tpu_custom_call.1} parent=1 // pred_fallthru
      _
    %v29 = vld [vmem:[%s0] sm:$0xff]
    %v30 = vld [vmem:[%s0 + $0x8] sm:$0xff]
    %v31 = vld [vmem:[%s0 + $0x10] sm:$0xff]
    %v32 = vld [vmem:[%s0 + $0x18] sm:$0xff]
    %v33 = vld [vmem:[%s0 + $0x20] sm:$0xff]
    %v34 = vld [vmem:[%s0 + $0x28] sm:$0xff]
    %v35 = vld [vmem:[%s0 + $0x30] sm:$0xff]
    %v36 = vld [vmem:[%s0 + $0x38] sm:$0xff]
    %v37 = vld [vmem:[%s0 + $0x40] sm:$0xff]
    %v38 = vld [vmem:[%s0 + $0x48] sm:$0xff]
    %v39 = vld [vmem:[%s0 + $0x50] sm:$0xff]
    %v40 = vld [vmem:[%s0 + $0x58] sm:$0xff]
    %v41 = vld [vmem:[%s0 + $0x60] sm:$0xff]
    %v42 = vld [vmem:[%s0 + $0x68] sm:$0xff]
    %v43 = vld [vmem:[%s0 + $0x70] sm:$0xff]
    %v44 = vld [vmem:[%s0 + $0x78] sm:$0xff]
    %v45 = vpack.c.bf16 %v30, %v29
    %v46 = vpack.c.bf16 %v32, %v31
    %v47 = vpack.c.bf16 %v34, %v33
    %v48 = vpack.c.bf16 %v36, %v35
    %v49 = vpack.c.bf16 %v38, %v37
    %v50 = vpack.c.bf16 %v40, %v39
    %v51 = vpack.c.bf16 %v42, %v41
    %v52 = vpack.c.bf16 %v44, %v43
    %v53 = vld [vmem:[%s1] sm:$0xff]
    %v54 = vld [vmem:[%s1 + $0x8] sm:$0xff]
    %v55 = vld [vmem:[%s1 + $0x10] sm:$0xff]
    %v56 = vld [vmem:[%s1 + $0x18] sm:$0xff]
    %v57 = vld [vmem:[%s2] sm:$0x3]
    %v59 = vlaneseq
    %v60 = vshrl.u32 %v59, 7
    %v61 = vsub.s32 0, %v60
    %v62 = vrot.slane %v57, %v61
    %v63 = vlaneseq
    %v64 = vshrl.u32 %v63, 7
    %v65 = vsub.s32 1, %v64
    %v66 = vrot.slane %v57, %v65
    %v73 = vunpack.c.l.b16 %v53
    %v74 = vunpack.c.h.b16 %v53
    %v75 = vunpack.c.l.b16 %v54
    %v76 = vunpack.c.h.b16 %v54
    %v77 = vunpack.c.l.b16 %v55
    %v78 = vunpack.c.h.b16 %v55
    %v79 = vunpack.c.l.b16 %v56
    %v80 = vunpack.c.h.b16 %v56
    %v81 = vpack.c.b16 %v75, %v73
    %v82 = vpack.c.b16 %v76, %v74
    %v83 = vpack.c.b16 %v79, %v77
    %v84 = vpack.c.b16 %v80, %v78
    %vm89 = vcmask 261120
    %v91 = vsel %vm89, %v45, 0
    %v94 = vsel %vm89, %v46, 0
    %v97 = vsel %vm89, %v47, 0
    %v100 = vsel %vm89, %v48, 0
    %v103 = vsel %vm89, %v49, 0
    %v106 = vsel %vm89, %v50, 0
    %v109 = vsel %vm89, %v51, 0
    %v112 = vsel %vm89, %v52, 0
    %114 = vmatprep.subr.bf16.mxu0 %v82
    %115 = vmatpush1.bf16.msra.mxu0 %v81
    %116 = vmatprep.subr.bf16.mxu0 %v84
    %117 = vmatpush1.bf16.msra.mxu0 %v83
    %118 = vmatprep.subr.bf16.mxu0 0
    %119 = vmatpush1.bf16.msra.mxu0 0
    %120 = vmatprep.subr.bf16.mxu0 0
    %121 = vmatpush1.bf16.msra.mxu0 0
    %122 = vmatprep.subr.bf16.mxu0 0
    %123 = vmatpush1.bf16.msra.mxu0 0
    %124 = vmatprep.subr.bf16.mxu0 0
    %125 = vmatpush1.bf16.msra.mxu0 0
    %126 = vmatprep.subr.bf16.mxu0 0
    %127 = vmatpush1.bf16.msra.mxu0 0
    %128 = vmatprep.subr.bf16.mxu0 0
    %129 = vmatpush1.bf16.msra.mxu0 0
    %130 = vmatprep.subr.bf16.mxu0 0
    %131 = vmatpush1.bf16.msra.mxu0 0
    %132 = vmatprep.subr.bf16.mxu0 0
    %133 = vmatpush1.bf16.msra.mxu0 0
    %134 = vmatprep.subr.bf16.mxu0 0
    %135 = vmatpush1.bf16.msra.mxu0 0
    %136 = vmatprep.subr.bf16.mxu0 0
    %137 = vmatpush1.bf16.msra.mxu0 0
    %138 = vmatprep.subr.bf16.mxu0 0
    %139 = vmatpush1.bf16.msra.mxu0 0
    %140 = vmatprep.subr.bf16.mxu0 0
    %141 = vmatpush1.bf16.msra.mxu0 0
    %142 = vmatprep.subr.bf16.mxu0 0
    %143 = vmatpush1.bf16.msra.mxu0 0
    %144 = vmatprep.subr.bf16.mxu0 0
    %145 = vmatpush1.bf16.msra.mxu0 0
    %146 = vmatprep.mubr.bf16.mxu0 0
    %147 = vmatmul.mubr.bf16.gmra.mrb[0].mxu0 %v91
    %v148 = vpop.f32.mrb[0].mxu0
    %v149 = vadd.f32 %v62, %v148
    %v150 = vpop.f32.mrb[0].mxu0
    %v151 = vadd.f32 %v66, %v150
    %v152 = vpop.f32.mrb[0].mxu0
    %v153 = vadd.f32 %v62, %v152
    %v154 = vpop.f32.mrb[0].mxu0
    %v155 = vadd.f32 %v66, %v154
    %156 = vmatprep.mubr.bf16.mxu0 0
    %157 = vmatmul.mubr.bf16.gmra.mrb[0].mxu0 %v94
    %v158 = vpop.f32.mrb[0].mxu0
    %v159 = vadd.f32 %v62, %v158
    %v160 = vpop.f32.mrb[0].mxu0
    %v161 = vadd.f32 %v66, %v160
    %v162 = vpop.f32.mrb[0].mxu0
    %v163 = vadd.f32 %v62, %v162
    %v164 = vpop.f32.mrb[0].mxu0
    %v165 = vadd.f32 %v66, %v164
    %166 = vmatprep.mubr.bf16.mxu0 0
    %167 = vmatmul.mubr.bf16.gmra.mrb[0].mxu0 %v97
    %v168 = vpop.f32.mrb[0].mxu0
    %v169 = vadd.f32 %v62, %v168
    %v170 = vpop.f32.mrb[0].mxu0
    %v171 = vadd.f32 %v66, %v170
    %v172 = vpop.f32.mrb[0].mxu0
    %v173 = vadd.f32 %v62, %v172
    %v174 = vpop.f32.mrb[0].mxu0
    %v175 = vadd.f32 %v66, %v174
    %176 = vmatprep.mubr.bf16.mxu0 0
    %177 = vmatmul.mubr.bf16.gmra.mrb[0].mxu0 %v100
    %v178 = vpop.f32.mrb[0].mxu0
    %v179 = vadd.f32 %v62, %v178
    %v180 = vpop.f32.mrb[0].mxu0
    %v181 = vadd.f32 %v66, %v180
    %v182 = vpop.f32.mrb[0].mxu0
    %v183 = vadd.f32 %v62, %v182
    %v184 = vpop.f32.mrb[0].mxu0
    %v185 = vadd.f32 %v66, %v184
    %186 = vmatprep.mubr.bf16.mxu0 0
    %187 = vmatmul.mubr.bf16.gmra.mrb[0].mxu0 %v103
    %v188 = vpop.f32.mrb[0].mxu0
    %v189 = vadd.f32 %v62, %v188
    %v190 = vpop.f32.mrb[0].mxu0
    %v191 = vadd.f32 %v66, %v190
    %v192 = vpop.f32.mrb[0].mxu0
    %v193 = vadd.f32 %v62, %v192
    %v194 = vpop.f32.mrb[0].mxu0
    %v195 = vadd.f32 %v66, %v194
    %196 = vmatprep.mubr.bf16.mxu0 0
    %197 = vmatmul.mubr.bf16.gmra.mrb[0].mxu0 %v106
    %v198 = vpop.f32.mrb[0].mxu0
    %v199 = vadd.f32 %v62, %v198
    %v200 = vpop.f32.mrb[0].mxu0
    %v201 = vadd.f32 %v66, %v200
    %v202 = vpop.f32.mrb[0].mxu0
    %v203 = vadd.f32 %v62, %v202
    %v204 = vpop.f32.mrb[0].mxu0
    %v205 = vadd.f32 %v66, %v204
    %206 = vmatprep.mubr.bf16.mxu0 0
    %207 = vmatmul.mubr.bf16.gmra.mrb[0].mxu0 %v109
    %v208 = vpop.f32.mrb[0].mxu0
    %v209 = vadd.f32 %v62, %v208
    %v210 = vpop.f32.mrb[0].mxu0
    %v211 = vadd.f32 %v66, %v210
    %v212 = vpop.f32.mrb[0].mxu0
    %v213 = vadd.f32 %v62, %v212
    %v214 = vpop.f32.mrb[0].mxu0
    %v215 = vadd.f32 %v66, %v214
    %216 = vmatprep.mubr.bf16.mxu0 0
    %217 = vmatmul.mubr.bf16.gmra.mrb[0].mxu0 %v112
    %v218 = vpop.f32.mrb[0].mxu0
    %v219 = vadd.f32 %v62, %v218
    %v220 = vpop.f32.mrb[0].mxu0
    %v221 = vadd.f32 %v66, %v220
    %v222 = vpop.f32.mrb[0].mxu0
    %v223 = vadd.f32 %v62, %v222
    %v224 = vpop.f32.mrb[0].mxu0
    %v225 = vadd.f32 %v66, %v224
    %226 = vdwg.mxu0
    %v227 = vmax.f32 %v149, 0.0
    %v228 = vmax.f32 %v151, 0.0
    %v229 = vmax.f32 %v153, 0.0
    %v230 = vmax.f32 %v155, 0.0
    %v231 = vmax.f32 %v159, 0.0
    %v232 = vmax.f32 %v161, 0.0
    %v233 = vmax.f32 %v163, 0.0
    %v234 = vmax.f32 %v165, 0.0
    %v235 = vmax.f32 %v169, 0.0
    %v236 = vmax.f32 %v171, 0.0
    %v237 = vmax.f32 %v173, 0.0
    %v238 = vmax.f32 %v175, 0.0
    %v239 = vmax.f32 %v179, 0.0
    %v240 = vmax.f32 %v181, 0.0
    %v241 = vmax.f32 %v183, 0.0
    %v242 = vmax.f32 %v185, 0.0
    %v243 = vmax.f32 %v189, 0.0
    %v244 = vmax.f32 %v191, 0.0
    %v245 = vmax.f32 %v193, 0.0
    %v246 = vmax.f32 %v195, 0.0
    %v247 = vmax.f32 %v199, 0.0
    %v248 = vmax.f32 %v201, 0.0
    %v249 = vmax.f32 %v203, 0.0
    %v250 = vmax.f32 %v205, 0.0
    %v251 = vmax.f32 %v209, 0.0
    %v252 = vmax.f32 %v211, 0.0
    %v253 = vmax.f32 %v213, 0.0
    %v254 = vmax.f32 %v215, 0.0
    %v255 = vmax.f32 %v219, 0.0
    %v256 = vmax.f32 %v221, 0.0
    %v257 = vmax.f32 %v223, 0.0
    %v258 = vmax.f32 %v225, 0.0
    %v259 = vpack.c.bf16 %v229, %v227
    %v260 = vpack.c.bf16 %v230, %v228
    %v261 = vpack.c.bf16 %v233, %v231
    %v262 = vpack.c.bf16 %v234, %v232
    %v263 = vpack.c.bf16 %v237, %v235
    %v264 = vpack.c.bf16 %v238, %v236
    %v265 = vpack.c.bf16 %v241, %v239
    %v266 = vpack.c.bf16 %v242, %v240
    %v267 = vpack.c.bf16 %v245, %v243
    %v268 = vpack.c.bf16 %v246, %v244
    %v269 = vpack.c.bf16 %v249, %v247
    %v270 = vpack.c.bf16 %v250, %v248
    %v271 = vpack.c.bf16 %v253, %v251
    %v272 = vpack.c.bf16 %v254, %v252
    %v273 = vpack.c.bf16 %v257, %v255
    %v274 = vpack.c.bf16 %v258, %v256
    %v275 = vld [vmem:[%s3] sm:$0xf]
    %v276 = vld [vmem:[%s3 + $0x4] sm:$0xf]
    %v277 = vld [vmem:[%s3 + $0x8] sm:$0xf]
    %v278 = vld [vmem:[%s3 + $0xc] sm:$0xf]
    %v279 = vld [vmem:[%s3 + $0x10] sm:$0xf]
    %v280 = vld [vmem:[%s3 + $0x14] sm:$0xf]
    %v281 = vld [vmem:[%s3 + $0x18] sm:$0xf]
    %v282 = vld [vmem:[%s3 + $0x1c] sm:$0xf]
    %v283 = vld [vmem:[%s3 + $0x20] sm:$0xf]
    %v284 = vld [vmem:[%s3 + $0x24] sm:$0xf]
    %v285 = vld [vmem:[%s3 + $0x28] sm:$0xf]
    %v286 = vld [vmem:[%s3 + $0x2c] sm:$0xf]
    %v287 = vld [vmem:[%s3 + $0x30] sm:$0xf]
    %v288 = vld [vmem:[%s3 + $0x34] sm:$0xf]
    %v289 = vld [vmem:[%s3 + $0x38] sm:$0xf]
    %v290 = vld [vmem:[%s3 + $0x3c] sm:$0xf]
    %v291 = vld [vmem:[%s3 + $0x40] sm:$0xf]
    %v292 = vld [vmem:[%s3 + $0x44] sm:$0xf]
    %v293 = vld [vmem:[%s3 + $0x48] sm:$0xf]
    %v294 = vld [vmem:[%s3 + $0x4c] sm:$0xf]
    %v295 = vld [vmem:[%s3 + $0x50] sm:$0xf]
    %v296 = vld [vmem:[%s3 + $0x54] sm:$0xf]
    %v297 = vld [vmem:[%s3 + $0x58] sm:$0xf]
    %v298 = vld [vmem:[%s3 + $0x5c] sm:$0xf]
    %v299 = vld [vmem:[%s3 + $0x60] sm:$0xf]
    %v300 = vld [vmem:[%s3 + $0x64] sm:$0xf]
    %v301 = vld [vmem:[%s3 + $0x68] sm:$0xf]
    %v302 = vld [vmem:[%s3 + $0x6c] sm:$0xf]
    %v303 = vld [vmem:[%s3 + $0x70] sm:$0xf]
    %v304 = vld [vmem:[%s3 + $0x74] sm:$0xf]
    %v305 = vld [vmem:[%s3 + $0x78] sm:$0xf]
    %v306 = vld [vmem:[%s3 + $0x7c] sm:$0xf]
    %v307 = vld [vmem:[%s4] sm:$0x1]
    %v309 = vlaneseq
    %v310 = vshrl.u32 %v309, 7
    %v311 = vsub.s32 0, %v310
    %v312 = vrot.slane %v307, %v311
    %v346 = vunpack.c.l.b16 %v275
    %v347 = vunpack.c.l.b16 %v276
    %v348 = vunpack.c.l.b16 %v277
    %v349 = vunpack.c.l.b16 %v278
    %v350 = vunpack.c.l.b16 %v279
    %v351 = vunpack.c.l.b16 %v280
    %v352 = vunpack.c.l.b16 %v281
    %v353 = vunpack.c.l.b16 %v282
    %v354 = vunpack.c.l.b16 %v283
    %v355 = vunpack.c.l.b16 %v284
    %v356 = vunpack.c.l.b16 %v285
    %v357 = vunpack.c.l.b16 %v286
    %v358 = vunpack.c.l.b16 %v287
    %v359 = vunpack.c.l.b16 %v288
    %v360 = vunpack.c.l.b16 %v289
    %v361 = vunpack.c.l.b16 %v290
    %v362 = vunpack.c.l.b16 %v291
    %v363 = vunpack.c.l.b16 %v292
    %v364 = vunpack.c.l.b16 %v293
    %v365 = vunpack.c.l.b16 %v294
    %v366 = vunpack.c.l.b16 %v295
    %v367 = vunpack.c.l.b16 %v296
    %v368 = vunpack.c.l.b16 %v297
    %v369 = vunpack.c.l.b16 %v298
    %v370 = vunpack.c.l.b16 %v299
    %v371 = vunpack.c.l.b16 %v300
    %v372 = vunpack.c.l.b16 %v301
    %v373 = vunpack.c.l.b16 %v302
    %v374 = vunpack.c.l.b16 %v303
    %v375 = vunpack.c.l.b16 %v304
    %v376 = vunpack.c.l.b16 %v305
    %v377 = vunpack.c.l.b16 %v306
    %v378 = vpack.c.b16 %v347, %v346
    %v379 = vpack.c.b16 %v349, %v348
    %v380 = vpack.c.b16 %v351, %v350
    %v381 = vpack.c.b16 %v353, %v352
    %v382 = vpack.c.b16 %v355, %v354
    %v383 = vpack.c.b16 %v357, %v356
    %v384 = vpack.c.b16 %v359, %v358
    %v385 = vpack.c.b16 %v361, %v360
    %v386 = vpack.c.b16 %v363, %v362
    %v387 = vpack.c.b16 %v365, %v364
    %v388 = vpack.c.b16 %v367, %v366
    %v389 = vpack.c.b16 %v369, %v368
    %v390 = vpack.c.b16 %v371, %v370
    %v391 = vpack.c.b16 %v373, %v372
    %v392 = vpack.c.b16 %v375, %v374
    %v393 = vpack.c.b16 %v377, %v376
    %410 = vmatprep.subr.bf16.mxu0 0
    %411 = vmatpush1.bf16.msra.mxu0 %v378
    %412 = vmatprep.subr.bf16.mxu0 0
    %413 = vmatpush1.bf16.msra.mxu0 %v379
    %414 = vmatprep.subr.bf16.mxu0 0
    %415 = vmatpush1.bf16.msra.mxu0 %v380
    %416 = vmatprep.subr.bf16.mxu0 0
    %417 = vmatpush1.bf16.msra.mxu0 %v381
    %418 = vmatprep.subr.bf16.mxu0 0
    %419 = vmatpush1.bf16.msra.mxu0 %v382
    %420 = vmatprep.subr.bf16.mxu0 0
    %421 = vmatpush1.bf16.msra.mxu0 %v383
    %422 = vmatprep.subr.bf16.mxu0 0
    %423 = vmatpush1.bf16.msra.mxu0 %v384
    %424 = vmatprep.subr.bf16.mxu0 0
    %425 = vmatpush1.bf16.msra.mxu0 %v385
    %426 = vmatprep.subr.bf16.mxu0 0
    %427 = vmatpush1.bf16.msra.mxu0 %v386
    %428 = vmatprep.subr.bf16.mxu0 0
    %429 = vmatpush1.bf16.msra.mxu0 %v387
    %430 = vmatprep.subr.bf16.mxu0 0
    %431 = vmatpush1.bf16.msra.mxu0 %v388
    %432 = vmatprep.subr.bf16.mxu0 0
    %433 = vmatpush1.bf16.msra.mxu0 %v389
    %434 = vmatprep.subr.bf16.mxu0 0
    %435 = vmatpush1.bf16.msra.mxu0 %v390
    %436 = vmatprep.subr.bf16.mxu0 0
    %437 = vmatpush1.bf16.msra.mxu0 %v391
    %438 = vmatprep.subr.bf16.mxu0 0
    %439 = vmatpush1.bf16.msra.mxu0 %v392
    %440 = vmatprep.subr.bf16.mxu0 0
    %441 = vmatpush1.bf16.msra.mxu0 %v393
    %442 = vmatprep.mubr.bf16.mxu0 %v260
    %443 = vmatmul.mubr.bf16.gmra.mrb[0].mxu0 %v259
    %v444 = vpop.f32.mrb[0].mxu0
    %v445 = vadd.f32 %v312, %v444
    %v446 = vpop.f32.mrb[0].mxu0
    %v447 = vpop.f32.mrb[0].mxu0
    %v448 = vadd.f32 %v312, %v447
    %v449 = vpop.f32.mrb[0].mxu0
    %450 = vmatprep.mubr.bf16.mxu0 %v262
    %451 = vmatmul.mubr.bf16.gmra.mrb[0].mxu0 %v261
    %v452 = vpop.f32.mrb[0].mxu0
    %v453 = vadd.f32 %v312, %v452
    %v454 = vpop.f32.mrb[0].mxu0
    %v455 = vpop.f32.mrb[0].mxu0
    %v456 = vadd.f32 %v312, %v455
    %v457 = vpop.f32.mrb[0].mxu0
    %458 = vmatprep.mubr.bf16.mxu0 %v264
    %459 = vmatmul.mubr.bf16.gmra.mrb[0].mxu0 %v263
    %v460 = vpop.f32.mrb[0].mxu0
    %v461 = vadd.f32 %v312, %v460
    %v462 = vpop.f32.mrb[0].mxu0
    %v463 = vpop.f32.mrb[0].mxu0
    %v464 = vadd.f32 %v312, %v463
    %v465 = vpop.f32.mrb[0].mxu0
    %466 = vmatprep.mubr.bf16.mxu0 %v266
    %467 = vmatmul.mubr.bf16.gmra.mrb[0].mxu0 %v265
    %v468 = vpop.f32.mrb[0].mxu0
    %v469 = vadd.f32 %v312, %v468
    %v470 = vpop.f32.mrb[0].mxu0
    %v471 = vpop.f32.mrb[0].mxu0
    %v472 = vadd.f32 %v312, %v471
    %v473 = vpop.f32.mrb[0].mxu0
    %474 = vmatprep.mubr.bf16.mxu0 %v268
    %475 = vmatmul.mubr.bf16.gmra.mrb[0].mxu0 %v267
    %v476 = vpop.f32.mrb[0].mxu0
    %v477 = vadd.f32 %v312, %v476
    %v478 = vpop.f32.mrb[0].mxu0
    %v479 = vpop.f32.mrb[0].mxu0
    %v480 = vadd.f32 %v312, %v479
    %v481 = vpop.f32.mrb[0].mxu0
    %482 = vmatprep.mubr.bf16.mxu0 %v270
    %483 = vmatmul.mubr.bf16.gmra.mrb[0].mxu0 %v269
    %v484 = vpop.f32.mrb[0].mxu0
    %v485 = vadd.f32 %v312, %v484
    %v486 = vpop.f32.mrb[0].mxu0
    %v487 = vpop.f32.mrb[0].mxu0
    %v488 = vadd.f32 %v312, %v487
    %v489 = vpop.f32.mrb[0].mxu0
    %490 = vmatprep.mubr.bf16.mxu0 %v272
    %491 = vmatmul.mubr.bf16.gmra.mrb[0].mxu0 %v271
    %v492 = vpop.f32.mrb[0].mxu0
    %v493 = vadd.f32 %v312, %v492
    %v494 = vpop.f32.mrb[0].mxu0
    %v495 = vpop.f32.mrb[0].mxu0
    %v496 = vadd.f32 %v312, %v495
    %v497 = vpop.f32.mrb[0].mxu0
    %498 = vmatprep.mubr.bf16.mxu0 %v274
    %499 = vmatmul.mubr.bf16.gmra.mrb[0].mxu0 %v273
    %v500 = vpop.f32.mrb[0].mxu0
    %v501 = vadd.f32 %v312, %v500
    %v502 = vpop.f32.mrb[0].mxu0
    %v503 = vpop.f32.mrb[0].mxu0
    %v504 = vadd.f32 %v312, %v503
    %v505 = vpop.f32.mrb[0].mxu0
    %506 = vdwg.mxu0
    %v507 = vmax.f32 %v445, 0.0
    %v508 = vmax.f32 %v448, 0.0
    %v509 = vmax.f32 %v453, 0.0
    %v510 = vmax.f32 %v456, 0.0
    %v511 = vmax.f32 %v461, 0.0
    %v512 = vmax.f32 %v464, 0.0
    %v513 = vmax.f32 %v469, 0.0
    %v514 = vmax.f32 %v472, 0.0
    %v515 = vmax.f32 %v477, 0.0
    %v516 = vmax.f32 %v480, 0.0
    %v517 = vmax.f32 %v485, 0.0
    %v518 = vmax.f32 %v488, 0.0
    %v519 = vmax.f32 %v493, 0.0
    %v520 = vmax.f32 %v496, 0.0
    %v521 = vmax.f32 %v501, 0.0
    %v522 = vmax.f32 %v504, 0.0
    %v523 = vpack.c.bf16 %v508, %v507
    %v524 = vpack.c.bf16 %v510, %v509
    %v525 = vpack.c.bf16 %v512, %v511
    %v526 = vpack.c.bf16 %v514, %v513
    %v527 = vpack.c.bf16 %v516, %v515
    %v528 = vpack.c.bf16 %v518, %v517
    %v529 = vpack.c.bf16 %v520, %v519
    %v530 = vpack.c.bf16 %v522, %v521
    %v531 = vld [vmem:[%s5] sm:$0xf]
    %v532 = vld [vmem:[%s5 + $0x4] sm:$0xf]
    %v533 = vld [vmem:[%s5 + $0x8] sm:$0xf]
    %v534 = vld [vmem:[%s5 + $0xc] sm:$0xf]
    %v535 = vld [vmem:[%s5 + $0x10] sm:$0xf]
    %v536 = vld [vmem:[%s5 + $0x14] sm:$0xf]
    %v537 = vld [vmem:[%s5 + $0x18] sm:$0xf]
    %v538 = vld [vmem:[%s5 + $0x1c] sm:$0xf]
    %v539 = vld [vmem:[#allocation2] sm:$0x1]
    %v541 = vlaneseq
    %v542 = vshrl.u32 %v541, 7
    %v543 = vsub.s32 0, %v542
    %v544 = vrot.slane %v539, %v543
    %v554 = vunpack.c.l.b16 %v531
    %v555 = vunpack.c.l.b16 %v532
    %v556 = vunpack.c.l.b16 %v533
    %v557 = vunpack.c.l.b16 %v534
    %v558 = vunpack.c.l.b16 %v535
    %v559 = vunpack.c.l.b16 %v536
    %v560 = vunpack.c.l.b16 %v537
    %v561 = vunpack.c.l.b16 %v538
    %v562 = vpack.c.b16 %v555, %v554
    %v563 = vpack.c.b16 %v557, %v556
    %v564 = vpack.c.b16 %v559, %v558
    %v565 = vpack.c.b16 %v561, %v560
    %vm570 = vcmask 523264
    %v572 = vsel %vm570, %v523, 0
    %v575 = vsel %vm570, %v524, 0
    %v578 = vsel %vm570, %v525, 0
    %v581 = vsel %vm570, %v526, 0
    %v584 = vsel %vm570, %v527, 0
    %v587 = vsel %vm570, %v528, 0
    %v590 = vsel %vm570, %v529, 0
    %v593 = vsel %vm570, %v530, 0
    %595 = vmatprep.subr.bf16.mxu0 0
    %596 = vmatpush1.bf16.msra.mxu0 %v562
    %597 = vmatprep.subr.bf16.mxu0 0
    %598 = vmatpush1.bf16.msra.mxu0 %v563
    %599 = vmatprep.subr.bf16.mxu0 0
    %600 = vmatpush1.bf16.msra.mxu0 %v564
    %601 = vmatprep.subr.bf16.mxu0 0
    %602 = vmatpush1.bf16.msra.mxu0 %v565
    %603 = vmatprep.subr.bf16.mxu0 0
    %604 = vmatpush1.bf16.msra.mxu0 0
    %605 = vmatprep.subr.bf16.mxu0 0
    %606 = vmatpush1.bf16.msra.mxu0 0
    %607 = vmatprep.subr.bf16.mxu0 0
    %608 = vmatpush1.bf16.msra.mxu0 0
    %609 = vmatprep.subr.bf16.mxu0 0
    %610 = vmatpush1.bf16.msra.mxu0 0
    %611 = vmatprep.subr.bf16.mxu0 0
    %612 = vmatpush1.bf16.msra.mxu0 0
    %613 = vmatprep.subr.bf16.mxu0 0
    %614 = vmatpush1.bf16.msra.mxu0 0
    %615 = vmatprep.subr.bf16.mxu0 0
    %616 = vmatpush1.bf16.msra.mxu0 0
    %617 = vmatprep.subr.bf16.mxu0 0
    %618 = vmatpush1.bf16.msra.mxu0 0
    %619 = vmatprep.subr.bf16.mxu0 0
    %620 = vmatpush1.bf16.msra.mxu0 0
    %621 = vmatprep.subr.bf16.mxu0 0
    %622 = vmatpush1.bf16.msra.mxu0 0
    %623 = vmatprep.subr.bf16.mxu0 0
    %624 = vmatpush1.bf16.msra.mxu0 0
    %625 = vmatprep.subr.bf16.mxu0 0
    %626 = vmatpush1.bf16.msra.mxu0 0
    %627 = vmatprep.mubr.bf16.mxu0 0
    %628 = vmatmul.mubr.bf16.gmra.mrb[0].mxu0 %v572
    %v629 = vpop.f32.mrb[0].mxu0
    %v630 = vadd.f32 %v544, %v629
    %v631 = vpop.f32.mrb[0].mxu0
    %v632 = vpop.f32.mrb[0].mxu0
    %v633 = vadd.f32 %v544, %v632
    %v634 = vpop.f32.mrb[0].mxu0
    %635 = vmatprep.mubr.bf16.mxu0 0
    %636 = vmatmul.mubr.bf16.gmra.mrb[0].mxu0 %v575
    %v637 = vpop.f32.mrb[0].mxu0
    %v638 = vadd.f32 %v544, %v637
    %v639 = vpop.f32.mrb[0].mxu0
    %v640 = vpop.f32.mrb[0].mxu0
    %v641 = vadd.f32 %v544, %v640
    %v642 = vpop.f32.mrb[0].mxu0
    %643 = vmatprep.mubr.bf16.mxu0 0
    %644 = vmatmul.mubr.bf16.gmra.mrb[0].mxu0 %v578
    %v645 = vpop.f32.mrb[0].mxu0
    %v646 = vadd.f32 %v544, %v645
    %v647 = vpop.f32.mrb[0].mxu0
    %v648 = vpop.f32.mrb[0].mxu0
    %v649 = vadd.f32 %v544, %v648
    %v650 = vpop.f32.mrb[0].mxu0
    %651 = vmatprep.mubr.bf16.mxu0 0
    %652 = vmatmul.mubr.bf16.gmra.mrb[0].mxu0 %v581
    %v653 = vpop.f32.mrb[0].mxu0
    %v654 = vadd.f32 %v544, %v653
    %v655 = vpop.f32.mrb[0].mxu0
    %v656 = vpop.f32.mrb[0].mxu0
    %v657 = vadd.f32 %v544, %v656
    %v658 = vpop.f32.mrb[0].mxu0
    %659 = vmatprep.mubr.bf16.mxu0 0
    %660 = vmatmul.mubr.bf16.gmra.mrb[0].mxu0 %v584
    %v661 = vpop.f32.mrb[0].mxu0
    %v662 = vadd.f32 %v544, %v661
    %v663 = vpop.f32.mrb[0].mxu0
    %v664 = vpop.f32.mrb[0].mxu0
    %v665 = vadd.f32 %v544, %v664
    %v666 = vpop.f32.mrb[0].mxu0
    %667 = vmatprep.mubr.bf16.mxu0 0
    %668 = vmatmul.mubr.bf16.gmra.mrb[0].mxu0 %v587
    %v669 = vpop.f32.mrb[0].mxu0
    %v670 = vadd.f32 %v544, %v669
    %v671 = vpop.f32.mrb[0].mxu0
    %v672 = vpop.f32.mrb[0].mxu0
    %v673 = vadd.f32 %v544, %v672
    %v674 = vpop.f32.mrb[0].mxu0
    %675 = vmatprep.mubr.bf16.mxu0 0
    %676 = vmatmul.mubr.bf16.gmra.mrb[0].mxu0 %v590
    %v677 = vpop.f32.mrb[0].mxu0
    %v678 = vadd.f32 %v544, %v677
    %v679 = vpop.f32.mrb[0].mxu0
    %v680 = vpop.f32.mrb[0].mxu0
    %v681 = vadd.f32 %v544, %v680
    %v682 = vpop.f32.mrb[0].mxu0
    %683 = vmatprep.mubr.bf16.mxu0 0
    %684 = vmatmul.mubr.bf16.gmra.mrb[0].mxu0 %v593
    %v685 = vpop.f32.mrb[0].mxu0
    %v686 = vadd.f32 %v544, %v685
    %v687 = vpop.f32.mrb[0].mxu0
    %v688 = vpop.f32.mrb[0].mxu0
    %v689 = vadd.f32 %v544, %v688
    %v690 = vpop.f32.mrb[0].mxu0
    %691 = vdwg.mxu0
    %vm692 = vcmask 7168
    %693 = vst.msk [vmem:[#allocation3] sm:$0xff] %vm692, %v630
    %694 = vst.msk [vmem:[#allocation3 + $0x8] sm:$0xff] %vm692, %v633
    %695 = vst.msk [vmem:[#allocation3 + $0x10] sm:$0xff] %vm692, %v638
    %696 = vst.msk [vmem:[#allocation3 + $0x18] sm:$0xff] %vm692, %v641
    %697 = vst.msk [vmem:[#allocation3 + $0x20] sm:$0xff] %vm692, %v646
    %698 = vst.msk [vmem:[#allocation3 + $0x28] sm:$0xff] %vm692, %v649
    %699 = vst.msk [vmem:[#allocation3 + $0x30] sm:$0xff] %vm692, %v654
    %700 = vst.msk [vmem:[#allocation3 + $0x38] sm:$0xff] %vm692, %v657
    %701 = vst.msk [vmem:[#allocation3 + $0x40] sm:$0xff] %vm692, %v662
    %702 = vst.msk [vmem:[#allocation3 + $0x48] sm:$0xff] %vm692, %v665
    %703 = vst.msk [vmem:[#allocation3 + $0x50] sm:$0xff] %vm692, %v670
    %704 = vst.msk [vmem:[#allocation3 + $0x58] sm:$0xff] %vm692, %v673
    %705 = vst.msk [vmem:[#allocation3 + $0x60] sm:$0xff] %vm692, %v678
    %706 = vst.msk [vmem:[#allocation3 + $0x68] sm:$0xff] %vm692, %v681
    %707 = vst.msk [vmem:[#allocation3 + $0x70] sm:$0xff] %vm692, %v686
    %708 = vst.msk [vmem:[#allocation3 + $0x78] sm:$0xff] %vm692, %v689
    // Predicated region
    $region30: #{tpu_custom_call.1} parent=1 // pred_check
      _
    $region31: #{tpu_custom_call.1} parent=1 // pred_check_branch
      %710 = sbr.rel (0) target = $region33
    $region32: #{tpu_custom_call.1} parent=1 // pred_region
      // Predicated region
      $region34: #{tpu_custom_call.1} parent=32 // pred_check
        _
      $region35: #{tpu_custom_call.1} parent=32 // pred_check_branch
        %712 = sbr.rel (0) target = $region37
      $region36: #{tpu_custom_call.1} parent=32 // pred_region
        // Predicated region
        $region38: #{tpu_custom_call.1} parent=36 // pred_check
          _
        $region39: #{tpu_custom_call.1} parent=36 // pred_check_branch
          %714 = sbr.rel (0) target = $region41
        $region40: #{tpu_custom_call.1} parent=36 // pred_region
          // Predicated region
          $region53: #{tpu_custom_call.1} parent=40 // pred_check
            _
          $region54: #{tpu_custom_call.1} parent=40 // pred_check_branch
            %729 = sbr.rel (0) target = $region56
          $region55: #{tpu_custom_call.1} parent=40 // pred_region
            loop: start=0, step=1, limit=1
            $region57: #{tpu_custom_call.1} parent=55 // loop_pre_header
              _
            $region58: #{tpu_custom_call.1} parent=55 // loop_header
              %s731 = sphi 0, %s735
              %p732 = scmp.ge.s32.totalorder %s731, 1
              %s736 = sphi [#allocation3], [#allocation3]
              %s737 = sphi %s7, %s7
            $region59: #{tpu_custom_call.1} parent=55 // loop_header_branch
              %734 = sbr.rel (%p732) target = $region63
            $region60: #{tpu_custom_call.1} parent=55 // loop_body
              %v738 = vld [vmem:[%s736] sm:$0xff]
              %739 = vst [vmem:[%s737] sm:$0xff] %v738
            $region61: #{tpu_custom_call.1} parent=55 // loop_footer
              %s735 = sadd.s32 1, %s731
            $region62: #{tpu_custom_call.1} parent=55 // loop_footer_branch
              %730 = sbr.rel target = $region58
            $region63: #{tpu_custom_call.1} parent=55 // loop_exit
              _
          $region56: #{tpu_custom_call.1} parent=40 // pred_fallthru
            _
          // Predicated region
          $region64: #{tpu_custom_call.1} parent=40 // pred_check
            _
          $region65: #{tpu_custom_call.1} parent=40 // pred_check_branch
            %741 = sbr.rel target = $region67
          $region66: #{tpu_custom_call.1} parent=40 // pred_region
            _
          $region67: #{tpu_custom_call.1} parent=40 // pred_fallthru
            _
        $region41: #{tpu_custom_call.1} parent=36 // pred_fallthru
          _
        // Predicated region
        $region42: #{tpu_custom_call.1} parent=36 // pred_check
          _
        $region43: #{tpu_custom_call.1} parent=36 // pred_check_branch
          %716 = sbr.rel target = $region45
        $region44: #{tpu_custom_call.1} parent=36 // pred_region
          loop: start=0, step=1, limit=1
          $region46: #{tpu_custom_call.1} parent=44 // loop_pre_header
            _
          $region47: #{tpu_custom_call.1} parent=44 // loop_header
            %s719 = sphi 0, %s723
            %p720 = scmp.ge.s32.totalorder %s719, 1
            %s724 = sphi [#allocation3], [#allocation3]
            %s725 = sphi %s7, %s7
          $region48: #{tpu_custom_call.1} parent=44 // loop_header_branch
            %722 = sbr.rel (%p720) target = $region52
          $region49: #{tpu_custom_call.1} parent=44 // loop_body
            %v726 = vld [vmem:[%s724] sm:$0xff]
            %727 = vst [vmem:[%s725] sm:$0xff] %v726
          $region50: #{tpu_custom_call.1} parent=44 // loop_footer
            %s723 = sadd.s32 1, %s719
          $region51: #{tpu_custom_call.1} parent=44 // loop_footer_branch
            %718 = sbr.rel target = $region47
          $region52: #{tpu_custom_call.1} parent=44 // loop_exit
            _
        $region45: #{tpu_custom_call.1} parent=36 // pred_fallthru
          _
      $region37: #{tpu_custom_call.1} parent=32 // pred_fallthru
        _
      %742 = vnop
    $region33: #{tpu_custom_call.1} parent=1 // pred_fallthru
      _
    // Predicated region
    $region68: #{tpu_custom_call.1} parent=1 // pred_check
      _
    $region69: #{tpu_custom_call.1} parent=1 // pred_check_branch
      %744 = sbr.rel (0) target = $region71
    $region70: #{tpu_custom_call.1} parent=1 // pred_region
      _
    $region71: #{tpu_custom_call.1} parent=1 // pred_fallthru
      _

</llo_original>
